<compile_context>
chip_gen: v7x
topology: tpu7x:2x2x1
jax: 0.10.0
libtpu: 0.0.40
codegen_flags: <defaults>
</compile_context>

<pallas_src>
import functools

import jax
import jax.numpy as jnp
from jax import lax
from jax.experimental import pallas as pl
from jax.experimental.pallas import tpu as pltpu

_LANE = 128
_SUBLANE = 8
_MAX_DEFER_CHUNKS = 64  # max unrolled per-lane adds per feature step


def _cdiv(a, b):
    return -(-a // b)


def _round_up(a, m):
    return _cdiv(a, m) * m


# ---------------------------------------------------------------------------
# Kernels
# ---------------------------------------------------------------------------
def _reduce_step(x, val_ref, acc_ref, *, n_feat, feat_tile, gk_split,
                 need_mask, defer_lanes):
    """Accumulate the f32 sum-of-squares of the current (tb, tn) tile."""
    k = pl.program_id(2)
    xf = x.astype(jnp.float32)
    xsq = xf * xf

    if need_mask:
        # Boundary / rounded-up feature tiles contain out-of-bounds garbage:
        # zero those squared terms before accumulating.
        p = pl.program_id(0)
        col0 = (p * gk_split + k) * feat_tile
        col = col0 + lax.broadcasted_iota(jnp.int32, xsq.shape, 1)
        xsq = jnp.where(col < n_feat, xsq, 0.0)

    if defer_lanes:
        # Per-lane partial sums: VPU-only adds inside the feature loop; the
        # single XLU lane-reduce is deferred to the last step.
        part = xsq[:, 0:_LANE]
        for q in range(1, feat_tile // _LANE):
            part = part + xsq[:, q * _LANE:(q + 1) * _LANE]
    else:
        part = jnp.sum(xsq, axis=1, keepdims=True)

    @pl.when(k == 0)
    def _():
        acc_ref[...] = jnp.zeros_like(acc_ref)

    acc_ref[...] += part

    @pl.when(k == pl.num_programs(2) - 1)
    def _():
        if defer_lanes:
            val_ref[...] = jnp.sum(acc_ref[...], axis=1, keepdims=True)
        else:
            val_ref[...] = acc_ref[...]


def _norm2_val_jac_kernel(x_ref, val_ref, jac_ref, acc_ref, **kw):
    x = x_ref[...]
    jac_ref[...] = x + x  # 2*x in the input dtype (no f32 round-trip)
    _reduce_step(x, val_ref, acc_ref, **kw)


def _norm2_val_kernel(x_ref, val_ref, acc_ref, **kw):
    _reduce_step(x_ref[...], val_ref, acc_ref, **kw)


# ---------------------------------------------------------------------------
# Tiling heuristic
# ---------------------------------------------------------------------------
def _choose_tiles(B, N, itemsize, target_block_bytes):
    """Pick (tb, tn, gb, gk) with bounded padding waste and >=2 batch steps
    whenever B allows it (v7x megacore)."""
    n128 = _round_up(N, _LANE)
    b8 = _round_up(B, _SUBLANE)

    # Feature axis: choose the number of tiles first, then balance them.
    max_tn = max(_LANE,
                 (target_block_bytes // (_SUBLANE * itemsize)) // _LANE * _LANE)
    gk = _cdiv(n128, max_tn)
    tn = _round_up(_cdiv(n128, gk), _LANE)
    gk = _cdiv(n128, tn)

    # Batch axis: fill the block budget; keep >=2 parallel steps when possible.
    max_tb = max(_SUBLANE,
                 (target_block_bytes // (tn * itemsize)) // _SUBLANE * _SUBLANE)
    gb = _cdiv(b8, max_tb)
    if gb < 2 and b8 >= 2 * _SUBLANE:
        gb = 2
    tb = _round_up(_cdiv(b8, gb), _SUBLANE)
    gb = _cdiv(b8, tb)
    return tb, tn, gb, gk


# ---------------------------------------------------------------------------
# Wrapper
# ---------------------------------------------------------------------------
def norm2_forward(x, with_jacobian=True, target_block_bytes=4 << 20,
                  vmem_limit_bytes=40 * 1024 * 1024):
    """Pallas implementation of Norm2.forward for 2-D input (B, N), dim=1.

    Returns val (B, 1) and, if with_jacobian, jac (B, 1, N) (JacType.FULL).
    Note: the reduction is accumulated in f32 and cast back to x.dtype.
    """
    B, N = x.shape
    itemsize = jnp.dtype(x.dtype).itemsize
    # val-only path double-buffers only the input, so it can afford 2x blocks
    # (helps most on v5e's lower HBM BW; still far below v7x's 64 MiB VMEM).
    budget = target_block_bytes if with_jacobian else 2 * target_block_bytes
    tb, tn, gb, gk = _choose_tiles(B, N, itemsize, budget)

    # v7x: if the batch axis cannot provide 2 parallel steps (B <= 8), split
    # the feature tiles 2-way across an outer parallel grid axis.  Only done
    # for an even tile count so there are no phantom tiles (zero extra work on
    # single-TC v5e/v6e); each half writes an f32 partial sum combined below.
    P = 2 if (gb == 1 and gk >= 2 and gk % 2 == 0) else 1
    gk_split = gk // P
    grid = (P, gb, gk_split)

    need_mask = (gk * tn != N)               # ragged / rounded-up feature axis
    defer_lanes = (tn // _LANE) <= _MAX_DEFER_CHUNKS
    acc_w = _LANE if defer_lanes else 1

    kw = dict(n_feat=N, feat_tile=tn, gk_split=gk_split,
              need_mask=need_mask, defer_lanes=defer_lanes)

    x_spec = pl.BlockSpec((tb, tn), lambda p, i, k: (i, p * gk_split + k))
    val_spec = pl.BlockSpec((None, tb, 1), lambda p, i, k: (p, i, 0))
    val_shape = jax.ShapeDtypeStruct((P, B, 1), jnp.float32)
    scratch = [pltpu.VMEM((tb, acc_w), jnp.float32)]
    cparams = pltpu.CompilerParams(
        dimension_semantics=("parallel", "parallel", "arbitrary"),
        vmem_limit_bytes=vmem_limit_bytes,
    )

    if with_jacobian:
        jac_spec = pl.BlockSpec((tb, tn), lambda p, i, k: (i, p * gk_split + k))
        val_p, jac_flat = pl.pallas_call(
            functools.partial(_norm2_val_jac_kernel, **kw),
            out_shape=(val_shape, jax.ShapeDtypeStruct((B, N), x.dtype)),
            grid_spec=pltpu.PrefetchScalarGridSpec(
                num_scalar_prefetch=0,
                grid=grid,
                in_specs=[x_spec],
                out_specs=(val_spec, jac_spec),
                scratch_shapes=scratch,
            ),
            compiler_params=cparams,
        )(x)
        val = jnp.sum(val_p, axis=0).astype(x.dtype)   # (B,1); free squeeze when P==1
        jac = jac_flat.reshape(B, 1, N)                # unsqueeze(1): free bitcast reshape
        return val, jac

    val_p = pl.pallas_call(
        functools.partial(_norm2_val_kernel, **kw),
        out_shape=val_shape,
        grid_spec=pltpu.PrefetchScalarGridSpec(
            num_scalar_prefetch=0,
            grid=grid,
            in_specs=[x_spec],
            out_specs=val_spec,
            scratch_shapes=scratch,
        ),
        compiler_params=cparams,
    )(x)
    return jnp.sum(val_p, axis=0).astype(x.dtype)


# ---------------------------------------------------------------------------
# Self-test
# ---------------------------------------------------------------------------
def _reference(x):
    val = jnp.sum(x.astype(jnp.float32) ** 2, axis=1, keepdims=True).astype(x.dtype)
    jac = (2.0 * x.astype(jnp.float32)).astype(x.dtype)[:, None, :]
    return val, jac


if __name__ == "__main__":
    key = jax.random.PRNGKey(0)

    # Case 1: aligned shape, default tiling (single block).
    B1, N1 = 8, 256
    x1 = jax.random.normal(key, (B1, N1), dtype=jnp.float32)
    val1, jac1 = norm2_forward(x1, with_jacobian=True)
    jax.block_until_ready((val1, jac1))
    vref1, jref1 = _reference(x1)
    assert val1.shape == (B1, 1) and jac1.shape == (B1, 1, N1)
    assert jnp.allclose(val1, vref1, rtol=1e-5, atol=1e-5)
    assert jnp.allclose(jac1, jref1, rtol=1e-6, atol=1e-6)

    # Case 2: ragged B and N (in-kernel column masking, clipped boundary blocks).
    B2, N2 = 6, 200
    x2 = jax.random.normal(jax.random.PRNGKey(1), (B2, N2), dtype=jnp.float32)
    val2, jac2 = norm2_forward(x2, with_jacobian=True)
    jax.block_until_ready((val2, jac2))
    vref2, jref2 = _reference(x2)
    assert val2.shape == (B2, 1) and jac2.shape == (B2, 1, N2)
    assert jnp.allclose(val2, vref2, rtol=1e-5, atol=1e-5)
    assert jnp.allclose(jac2, jref2, rtol=1e-6, atol=1e-6)

    # Case 3: tiny block budget -> multiple batch + feature tiles with ragged
    # remainders on both axes (reduction accumulator across feature steps).
    B3, N3 = 27, 250
    x3 = jax.random.normal(jax.random.PRNGKey(2), (B3, N3), dtype=jnp.float32)
    val3, jac3 = norm2_forward(x3, with_jacobian=True, target_block_bytes=4096)
    jax.block_until_ready((val3, jac3))
    vref3, jref3 = _reference(x3)
    assert jnp.allclose(val3, vref3, rtol=1e-5, atol=1e-5)
    assert jnp.allclose(jac3, jref3, rtol=1e-6, atol=1e-6)

    # Case 4: small B, multiple feature tiles -> 2-way parallel feature split
    # (P=2 path: partial sums combined in the wrapper).
    B4, N4 = 4, 512
    x4 = jax.random.normal(jax.random.PRNGKey(3), (B4, N4), dtype=jnp.float32)
    val4, jac4 = norm2_forward(x4, with_jacobian=True, target_block_bytes=4096)
    jax.block_until_ready((val4, jac4))
    vref4, jref4 = _reference(x4)
    assert jnp.allclose(val4, vref4, rtol=1e-5, atol=1e-5)
    assert jnp.allclose(jac4, jref4, rtol=1e-6, atol=1e-6)

    # Case 5: val-only path (no jac writeback).
    val5 = norm2_forward(x2, with_jacobian=False)
    jax.block_until_ready(val5)
    assert val5.shape == (B2, 1)
    assert jnp.allclose(val5, vref2, rtol=1e-5, atol=1e-5)

    # TODO(synk): the Jacobian/JacType Python wrapper classes are metadata-only
    # (tagging); jac is returned as a plain (B, 1, N) array (JacType.FULL).
    print("KERNEL_OK")
</pallas_src>

<mosaic_0001>
module attributes {stable_mosaic.version = 11 : i64} {
  func.func @_norm2_val_jac_kernel(%arg0: i32, %arg1: i32, %arg2: i32, %arg3: memref<8x256xf32, #tpu.memory_space<vmem>>, %arg4: memref<1x8x1xf32, #tpu.memory_space<vmem>>, %arg5: memref<8x256xf32, #tpu.memory_space<vmem>>, %arg6: memref<8x128xf32, #tpu.memory_space<vmem>>) attributes {dimension_semantics = [#tpu.dimension_semantics<parallel>, #tpu.dimension_semantics<parallel>, #tpu.dimension_semantics<arbitrary>], iteration_bounds = array<i64: 1, 1, 1>, scalar_prefetch = 0 : i64, scratch_operands = 1 : i64, tpu.core_type = #tpu.core_type<tc>, window_params = [{transform_indices = @transform_0, window_bounds = array<i64: 8, 256>}, {transform_indices = @transform_1, window_bounds = array<i64: 1, 8, 1>}, {transform_indices = @transform_2, window_bounds = array<i64: 8, 256>}]} {
    %c0 = arith.constant 0 : index
    %c0_0 = arith.constant 0 : index
    %0 = vector.load %arg3[%c0, %c0_0] : memref<8x256xf32, #tpu.memory_space<vmem>>, vector<8x256xf32>
    %1 = arith.addf %0, %0 : vector<8x256xf32>
    %c0_1 = arith.constant 0 : index
    %c0_2 = arith.constant 0 : index
    %2 = vector.load %arg5[%c0_1, %c0_2] : memref<8x256xf32, #tpu.memory_space<vmem>>, vector<8x256xf32>
    tpu.vector_store %arg5[%c0_1, %c0_2], %1 {strides = array<i32>} : memref<8x256xf32, #tpu.memory_space<vmem>>, vector<8x256xf32>,
    %3 = arith.mulf %0, %0 : vector<8x256xf32>
    %4 = vector.extract_strided_slice %3 {offsets = [0, 0], sizes = [8, 128], strides = [1, 1]} : vector<8x256xf32> to vector<8x128xf32>
    %5 = vector.extract_strided_slice %3 {offsets = [0, 128], sizes = [8, 128], strides = [1, 1]} : vector<8x256xf32> to vector<8x128xf32>
    %6 = arith.addf %4, %5 : vector<8x128xf32>
    %c0_i32 = arith.constant 0 : i32
    %7 = arith.cmpi eq, %arg2, %c0_i32 : i32
    %8 = arith.extui %7 : i1 to i32
    %c0_i32_3 = arith.constant 0 : i32
    %9 = arith.cmpi ne, %8, %c0_i32_3 : i32
    scf.if %9 {
      %cst = arith.constant 0.000000e+00 : f32
      %16 = vector.broadcast %cst : f32 to vector<8x128xf32>
      %c0_10 = arith.constant 0 : index
      %c0_11 = arith.constant 0 : index
      %17 = vector.load %arg6[%c0_10, %c0_11] : memref<8x128xf32, #tpu.memory_space<vmem>>, vector<8x128xf32>
      tpu.vector_store %arg6[%c0_10, %c0_11], %16 {strides = array<i32>} : memref<8x128xf32, #tpu.memory_space<vmem>>, vector<8x128xf32>,
    } else {
    }
    %c0_4 = arith.constant 0 : index
    %c0_5 = arith.constant 0 : index
    %10 = vector.load %arg6[%c0_4, %c0_5] : memref<8x128xf32, #tpu.memory_space<vmem>>, vector<8x128xf32>
    %11 = arith.addf %10, %6 : vector<8x128xf32>
    %c0_6 = arith.constant 0 : index
    %c0_7 = arith.constant 0 : index
    %12 = vector.load %arg6[%c0_6, %c0_7] : memref<8x128xf32, #tpu.memory_space<vmem>>, vector<8x128xf32>
    tpu.vector_store %arg6[%c0_6, %c0_7], %11 {strides = array<i32>} : memref<8x128xf32, #tpu.memory_space<vmem>>, vector<8x128xf32>,
    %c0_i32_8 = arith.constant 0 : i32
    %13 = arith.cmpi eq, %arg2, %c0_i32_8 : i32
    %14 = arith.extui %13 : i1 to i32
    %c0_i32_9 = arith.constant 0 : i32
    %15 = arith.cmpi ne, %14, %c0_i32_9 : i32
    scf.if %15 {
      %c0_10 = arith.constant 0 : index
      %c0_11 = arith.constant 0 : index
      %16 = vector.load %arg6[%c0_10, %c0_11] : memref<8x128xf32, #tpu.memory_space<vmem>>, vector<8x128xf32>
      %cst = arith.constant dense<0.000000e+00> : vector<8xf32>
      %17 = vector.multi_reduction <add>, %16, %cst [1] : vector<8x128xf32> to vector<8xf32>
      %18 = vector.shape_cast %17 : vector<8xf32> to vector<8x1xf32>
      %c0_12 = arith.constant 0 : index
      %c0_13 = arith.constant 0 : index
      %c0_14 = arith.constant 0 : index
      %19 = vector.load %arg4[%c0_12, %c0_13, %c0_14] : memref<1x8x1xf32, #tpu.memory_space<vmem>>, vector<1x8x1xf32>
      %20 = vector.shape_cast %19 : vector<1x8x1xf32> to vector<8x1xf32>
      %21 = vector.shape_cast %18 : vector<8x1xf32> to vector<1x8x1xf32>
      tpu.vector_store %arg4[%c0_12, %c0_13, %c0_14], %21 {strides = array<i32>} : memref<1x8x1xf32, #tpu.memory_space<vmem>>, vector<1x8x1xf32>,
    } else {
    }
    return
  }
  func.func @transform_0(%arg0: i32, %arg1: i32, %arg2: i32) -> (i32, i32) {
    %c1_i32 = arith.constant 1 : i32
    %0 = arith.muli %arg0, %c1_i32 : i32
    %1 = arith.addi %0, %arg2 : i32
    %c0_i32 = arith.constant 0 : i32
    return %arg1, %1 : i32, i32
  }
  func.func @transform_1(%arg0: i32, %arg1: i32, %arg2: i32) -> (i32, i32, i32) {
    %c0_i32 = arith.constant 0 : i32
    %c0_i32_0 = arith.constant 0 : i32
    return %arg0, %arg1, %c0_i32 : i32, i32, i32
  }
  func.func @transform_2(%arg0: i32, %arg1: i32, %arg2: i32) -> (i32, i32) {
    %c1_i32 = arith.constant 1 : i32
    %0 = arith.muli %arg0, %c1_i32 : i32
    %1 = arith.addi %0, %arg2 : i32
    %c0_i32 = arith.constant 0 : i32
    return %arg1, %1 : i32, i32
  }
}

</mosaic_0001>

<llo_original>
// kernel: tpu_custom_call.1
$region0: #{tpu_custom_call.1}
  #allocation0 [shape = 'u32[]', space=smem, size = 0x4, offset = 0x4, fixed_abs, tag = 'smem constant byte address 0x4 - core index']
  #allocation1 [shape = 'u32[144,128]{1,0:T(1,128)}', space=vmem, size = 0x12000, scoped, tag = 'internal scratch']
  #allocation2 [shape = 'f32[8,128]{1,0:T(8,128)}', space=vmem, size = 0x1000, scoped, tag = 'scratch operand']
  %s0 = inlined_call_operand.hbm [shape: f32[8,256], index: 0, kind: input, shape index: {}]
  %s1 = inlined_call_operand.vmem [shape: f32[1,8,1], index: 1, kind: output, shape index: {0}]
  %s2 = inlined_call_operand.hbm [shape: f32[8,256], index: 2, kind: output, shape index: {1}]
  %3 = xla_tuple %s1, %s2
  %s4 = sld [smem:[#allocation0]]
  $region34: #{tpu_custom_call.1} parent=0
    _
  %s6 = ssub.s32 1, %s4
  %s7 = scalar_select 0, %s6, %s4
  $region1: #{tpu_custom_call.1} parent=0
    #allocation3 [shape = 'u8[8192]{0}', space=vmem, size = 0x2000, scoped, tag = 'input window, operand 0, single buffered']
    #allocation4 [shape = 's32[1]{0}', space=sflag, size = 0x4, scoped, tag = 'scoped memory for tpu_custom_call.1']
    #allocation5 [shape = 's32[1]{0}', space=sflag, size = 0x4, scoped, tag = 'scoped memory for tpu_custom_call.1']
    #allocation6 [shape = 'u8[8192]{0}', space=vmem, size = 0x2000, scoped, tag = 'output window, operand 1, single buffered']
    %8 = vsyncpa [#allocation4], 0
    %9 = vsyncpa [#allocation5], 0
    // Predicated region
    $region2: #{tpu_custom_call.1} parent=1 // pred_check
      _
    $region3: #{tpu_custom_call.1} parent=1 // pred_check_branch
      %11 = sbr.rel (0) target = $region5
    $region4: #{tpu_custom_call.1} parent=1 // pred_region
      %s12 = sadd.s32 0, 0
      %s13 = smul.u32 2, %s12
      %s15 = ssub.s32 256, 256
      %16 = vsyncadd [#allocation4], %s15
      %s17 = smul.addr %s13, 128
      %s18 = scalar_lea.hbm %s0, %s17
      %s20 = sshll.u32 [#allocation3], 4
      %s21 = int_to_ptr.vmem [resolvable:$true] %s20
      %23 = dma.hbm_to_vmem [thread:$0]  %s18, 256, %s21, [#allocation4]
    $region5: #{tpu_custom_call.1} parent=1 // pred_fallthru
      _
    // Predicated region
    $region6: #{tpu_custom_call.1} parent=1 // pred_check
      _
    $region7: #{tpu_custom_call.1} parent=1 // pred_check_branch
      %25 = sbr.rel (0) target = $region9
    $region8: #{tpu_custom_call.1} parent=1 // pred_region
      %26 = dma.done [#allocation4], 256
    $region9: #{tpu_custom_call.1} parent=1 // pred_fallthru
      _
    %s27 = sadd.s32 0, 0
    %s28 = smul.u32 2, %s27
    %s29 = sadd.s32 0, 0
    %s30 = smul.u32 2, %s29
    %v31 = vld [vmem:[#allocation3] sm:$0xff]
    %v32 = vld [vmem:[#allocation3 + $0x8] sm:$0xff]
    %v33 = vadd.f32 %v31, %v31
    %v34 = vadd.f32 %v32, %v32
    %35 = vst [vmem:[#allocation6] sm:$0xff] %v33
    %36 = vst [vmem:[#allocation6 + $0x8] sm:$0xff] %v34
    %v37 = vmul.f32 %v31, %v31
    %v38 = vmul.f32 %v32, %v32
    %v39 = vadd.f32 %v37, %v38
    %p40 = scmp.eq.s32.totalorder 0, 0
    // Predicated region
    $region10: #{tpu_custom_call.1} parent=1 // pred_check
      %p41 = pneg %p40
    $region11: #{tpu_custom_call.1} parent=1 // pred_check_branch
      %43 = sbr.rel (%p41) target = $region13
    $region12: #{tpu_custom_call.1} parent=1 // pred_region
      %44 = vst [vmem:[#allocation2] sm:$0xff] 0.0
    $region13: #{tpu_custom_call.1} parent=1 // pred_fallthru
      _
    %v45 = vld [vmem:[#allocation2] sm:$0xff]
    %v46 = vadd.f32 %v45, %v39
    %47 = vst [vmem:[#allocation2] sm:$0xff] %v46
    // Predicated region
    $region14: #{tpu_custom_call.1} parent=1 // pred_check
      %p48 = pneg %p40
    $region15: #{tpu_custom_call.1} parent=1 // pred_check_branch
      %50 = sbr.rel (%p48) target = $region17
    $region16: #{tpu_custom_call.1} parent=1 // pred_region
      %v51 = vld [vmem:[#allocation2] sm:$0xff]
      %52 = vadd.xlane.f32.xlu0 %v51
      %v53 = vpop.xlane.xlu0 %52
      %vm54 = vcmask 7168
      %55 = vst.msk [vmem:[%s1] sm:$0xff] %vm54, %v53
    $region17: #{tpu_custom_call.1} parent=1 // pred_fallthru
      _
    // Predicated region
    $region18: #{tpu_custom_call.1} parent=1 // pred_check
      _
    $region19: #{tpu_custom_call.1} parent=1 // pred_check_branch
      %57 = sbr.rel (0) target = $region21
    $region20: #{tpu_custom_call.1} parent=1 // pred_region
      _
    $region21: #{tpu_custom_call.1} parent=1 // pred_fallthru
      _
    // Predicated region
    $region22: #{tpu_custom_call.1} parent=1 // pred_check
      _
    $region23: #{tpu_custom_call.1} parent=1 // pred_check_branch
      %59 = sbr.rel (0) target = $region25
    $region24: #{tpu_custom_call.1} parent=1 // pred_region
      %s60 = sadd.s32 0, 0
      %s61 = smul.u32 2, %s60
      %s63 = ssub.s32 256, 256
      %64 = vsyncadd [#allocation5], %s63
      %s65 = smul.addr %s61, 128
      %s66 = scalar_lea.hbm %s2, %s65
      %s68 = sshll.u32 [#allocation6], 4
      %s69 = int_to_ptr.vmem [resolvable:$true] %s68
      %71 = dma.vmem_to_hbm [thread:$0]  %s69, 256, %s66, [#allocation5]
    $region25: #{tpu_custom_call.1} parent=1 // pred_fallthru
      _
    // Predicated region
    $region26: #{tpu_custom_call.1} parent=1 // pred_check
      _
    $region27: #{tpu_custom_call.1} parent=1 // pred_check_branch
      %73 = sbr.rel (0) target = $region29
    $region28: #{tpu_custom_call.1} parent=1 // pred_region
      _
    $region29: #{tpu_custom_call.1} parent=1 // pred_fallthru
      _
    // Predicated region
    $region30: #{tpu_custom_call.1} parent=1 // pred_check
      _
    $region31: #{tpu_custom_call.1} parent=1 // pred_check_branch
      %75 = sbr.rel (0) target = $region33
    $region32: #{tpu_custom_call.1} parent=1 // pred_region
      %76 = dma.done [#allocation5], 256
    $region33: #{tpu_custom_call.1} parent=1 // pred_fallthru
      _
    %77 = vsyncpa [#allocation4], 1
    %78 = vsyncpa [#allocation5], 1

</llo_original>
